<compile_context>
chip_gen: v5e
topology: v5e:2x2
jax: 0.10.0
libtpu: 0.0.40
codegen_flags: <defaults>
</compile_context>

<pallas_src>
import jax
import jax.numpy as jnp
from jax import lax
from jax.experimental import pallas as pl
from jax.experimental.pallas import tpu as pltpu

_EPS = 1e-12            # torch.nn.functional.normalize clamps the L2 norm at eps
_EPS_SQ = _EPS * _EPS   # ~1e-24, still a normal f32


def _round_up(a, b):
    return ((a + b - 1) // b) * b


def _vmem_limit_bytes():
    cap = 64 << 20                      # conservative fallback (v7x per-TC physical)
    try:
        cap = int(pltpu.get_tpu_info().vmem_capacity_bytes)
    except Exception:
        pass
    # v5e/v6e (128 MiB physical) -> 64 MiB scoped; v7x (64 MiB physical) -> 32 MiB.
    return min(max(cap // 2, 16 << 20), 64 << 20)


def _pick_lane_pack(seq, dim):
    """Largest power-of-two k with k*dim <= 128 lanes, seq % k == 0 and >= 8 rows left.
    k == 1 means plain dim-on-lanes layout (dim >= 128, odd dims, or tiny seq)."""
    if dim >= 128 or dim <= 0 or (128 % dim) != 0:
        return 1
    k = 128 // dim
    while k > 1:
        if seq % k == 0 and (seq // k) >= 8:
            return k
        k //= 2
    return 1


def _make_kernel(dim, k):
    lane_w = dim * k

    def kernel(x_ref, g_ref, o_ref):
        # x_ref: (BB, HB, TS, lane_w)   g_ref: (HB, 1, lane_w) = gamma[head]*sqrt(dim)
        x = x_ref[...].astype(jnp.float32)
        g = g_ref[...].astype(jnp.float32)[None]              # (1, HB, 1, lane_w)
        xx = x * x
        if k == 1:
            ss = jnp.sum(xx, axis=-1, keepdims=True)           # lane reduce (XLU slot)
            inv = lax.rsqrt(jnp.maximum(ss, _EPS_SQ))          # EUP slot
        else:
            # k seq positions packed per row: per-segment sum of squares via masked
            # lane reduces, then broadcast rsqrt back onto that segment's lanes.
            seg = lax.broadcasted_iota(jnp.int32, (1, 1, 1, lane_w), 3) // dim
            inv = jnp.zeros_like(x)
            for s in range(k):                                  # k <= 8, static
                m = seg == s
                ss_s = jnp.sum(jnp.where(m, xx, 0.0), axis=-1, keepdims=True)
                inv = jnp.where(m, lax.rsqrt(jnp.maximum(ss_s, _EPS_SQ)), inv)
        o_ref[...] = (x * inv * g).astype(o_ref.dtype)

    return kernel


def multi_headed_rms_norm(x, gamma, *, target_block_bytes=None):
    """F.normalize(x, dim=-1) * dim**0.5 * gamma, with gamma of shape (heads, 1, dim)."""
    heads, one, dim = (int(s) for s in gamma.shape)
    assert one == 1
    assert int(x.shape[-1]) == dim
    if heads > 1:
        assert x.ndim >= 3 and int(x.shape[-3]) == heads, (
            "x must be (..., heads, seq, dim) to broadcast against gamma (heads, 1, dim)")
        lead = x.shape[:-3]
    else:
        assert x.ndim >= 2
        lead = x.shape[:-2]
    seq = int(x.shape[-2])
    batch = 1
    for d in lead:
        batch *= int(d)

    # Lane-dense view for small head dims: (seq, dim) -> (seq//k, k*dim).  Free
    # row-major reshape (no transpose, no extra HBM pass); k == 1 keeps dim on lanes.
    k = _pick_lane_pack(seq, dim)
    rows, lane_w = seq // k, dim * k

    x4 = x.reshape(batch, heads, rows, lane_w)
    g_lane = gamma.astype(jnp.float32).reshape(heads, 1, dim) * (float(dim) ** 0.5)
    if k > 1:
        g_lane = jnp.tile(g_lane, (1, 1, k))                   # (heads, 1, lane_w), tiny

    itemsize = int(x.dtype.itemsize)
    sub = 8 * max(1, 4 // itemsize)                            # 8 f32 / 16 bf16 / 32 i8
    vmem_limit = _vmem_limit_bytes()
    if target_block_bytes is None:
        target = min(vmem_limit // 8, 8 << 20)                 # 8 MiB v5e/v6e, 4 MiB v7x
    else:
        target = min(int(target_block_bytes), vmem_limit // 5)
    target = max(target, 1)

    # Padded VMEM footprint of one (batch, head) slab (lane pad to 128, sublane pad).
    row_bytes = _round_up(lane_w, 128) * itemsize
    slice_bytes = _round_up(rows, sub) * row_bytes

    if slice_bytes > target:
        # A single head slab is already large: tile the row axis only.
        ts = max(sub, ((target // max(row_bytes, 1)) // sub) * sub)
        ts = min(ts, rows)
        hb, bb = 1, 1
    else:
        # Fuse whole heads (and whole batch entries) into one multi-MiB block.
        ts = rows
        hb = max(1, min(heads, target // slice_bytes))
        if hb >= heads:
            hb = heads
            bb = max(1, min(batch, target // (heads * slice_bytes)))
        else:
            bb = 1

    grid = (pl.cdiv(batch, bb), pl.cdiv(heads, hb), pl.cdiv(rows, ts))

    n_elem = batch * heads * seq * dim
    cost = pl.CostEstimate(
        flops=4 * n_elem,
        transcendentals=batch * heads * seq,
        bytes_accessed=2 * n_elem * itemsize + heads * dim * 4,
    )

    # TODO(synk): if xprof shows exposed DMA gaps between the (fused, few) grid steps,
    # try pipeline_mode=pl.Buffered(3) on the x spec where the VMEM budget allows it.
    out = pl.pallas_call(
        _make_kernel(dim, k),
        out_shape=jax.ShapeDtypeStruct((batch, heads, rows, lane_w), x.dtype),
        grid_spec=pltpu.PrefetchScalarGridSpec(
            num_scalar_prefetch=0,
            grid=grid,
            in_specs=[
                pl.BlockSpec((bb, hb, ts, lane_w), lambda b, h, s: (b, h, s, 0)),
                pl.BlockSpec((hb, 1, lane_w), lambda b, h, s: (h, 0, 0)),
            ],
            out_specs=pl.BlockSpec((bb, hb, ts, lane_w), lambda b, h, s: (b, h, s, 0)),
        ),
        compiler_params=pltpu.CompilerParams(
            # All axes independent -> megacore sharding on v7x (2 TCs per chip).
            dimension_semantics=("parallel", "parallel", "parallel"),
            vmem_limit_bytes=vmem_limit,
        ),
        cost_estimate=cost,
    )(x4, g_lane)

    return out.reshape(x.shape)


def _reference(x, gamma):
    dim = x.shape[-1]
    xf = x.astype(jnp.float32)
    norm = jnp.sqrt(jnp.sum(xf * xf, axis=-1, keepdims=True))
    y = xf / jnp.maximum(norm, _EPS)
    return (y * (float(dim) ** 0.5) * gamma.astype(jnp.float32)).astype(x.dtype)


def _check(x, gamma, tol, **kw):
    out = jax.block_until_ready(multi_headed_rms_norm(x, gamma, **kw))
    ref = _reference(x, gamma)
    assert out.shape == x.shape and out.dtype == x.dtype
    err = float(jnp.max(jnp.abs(out.astype(jnp.float32) - ref.astype(jnp.float32))))
    assert err < tol, f"max abs err {err} >= {tol}"


if __name__ == "__main__":
    key = jax.random.PRNGKey(0)
    k0, k1, k2, k3, k4 = jax.random.split(key, 5)

    # Module default init: gamma = torch.ones(heads, 1, dim); x = (batch, heads, seq, dim).
    x = jax.random.normal(k0, (2, 4, 8, 32), dtype=jnp.float32)
    _check(x, jnp.ones((4, 1, 32), jnp.float32), 1e-3)

    # Non-trivial per-head gamma (plain dim-on-lanes path, k == 1).
    g = jax.random.normal(k1, (4, 1, 32), dtype=jnp.float32)
    _check(x, g, 1e-3)

    # Lane-dense path (dim=32 -> k=4 -> 128 lanes) with fused batch+head blocks.
    x2 = jax.random.normal(k2, (2, 4, 64, 32), dtype=jnp.float32)
    g2 = jax.random.normal(k3, (4, 1, 32), dtype=jnp.float32)
    _check(x2, g2, 1e-3)
    # Tiny block budget: exercises seq tiling and a >1 grid.
    _check(x2, g2, 1e-3, target_block_bytes=4096)
    # Partial head blocks (HB=3 of 4 heads): exercises boundary-block handling.
    _check(x2, g2, 1e-3, target_block_bytes=3 * 16 * 128 * 4)

    # bf16 input (16-row sublane alignment), dim=64 -> k=2 lane packing.
    x3 = jax.random.normal(k4, (2, 2, 64, 64), dtype=jnp.bfloat16)
    _check(x3, jnp.ones((2, 1, 64), jnp.float32), 5e-2)

    # heads == 1: gamma broadcasts against a plain (..., seq, dim) input.
    x5 = jax.random.normal(k0, (2, 16, 128), dtype=jnp.float32)
    _check(x5, jnp.ones((1, 1, 128), jnp.float32), 1e-3)

    print("KERNEL_OK")
</pallas_src>

<mosaic_0001>
module attributes {stable_mosaic.version = 11 : i64} {
  func.func @kernel(%arg0: i32, %arg1: i32, %arg2: i32, %arg3: memref<2x4x8x32xf32, #tpu.memory_space<vmem>>, %arg4: memref<4x1x32xf32, #tpu.memory_space<vmem>>, %arg5: memref<2x4x8x32xf32, #tpu.memory_space<vmem>>) attributes {dimension_semantics = [#tpu.dimension_semantics<parallel>, #tpu.dimension_semantics<parallel>, #tpu.dimension_semantics<parallel>], iteration_bounds = array<i64: 1, 1, 1>, scalar_prefetch = 0 : i64, scratch_operands = 0 : i64, tpu.core_type = #tpu.core_type<tc>, window_params = [{transform_indices = @transform_0, window_bounds = array<i64: 2, 4, 8, 32>}, {transform_indices = @transform_1, window_bounds = array<i64: 4, 1, 32>}, {transform_indices = @transform_2, window_bounds = array<i64: 2, 4, 8, 32>}]} {
    %c0 = arith.constant 0 : index
    %c0_0 = arith.constant 0 : index
    %c0_1 = arith.constant 0 : index
    %c0_2 = arith.constant 0 : index
    %0 = vector.load %arg3[%c0, %c0_0, %c0_1, %c0_2] : memref<2x4x8x32xf32, #tpu.memory_space<vmem>>, vector<2x4x8x32xf32>
    %c0_3 = arith.constant 0 : index
    %c0_4 = arith.constant 0 : index
    %c0_5 = arith.constant 0 : index
    %1 = vector.load %arg4[%c0_3, %c0_4, %c0_5] : memref<4x1x32xf32, #tpu.memory_space<vmem>>, vector<4x1x32xf32>
    %2 = vector.shape_cast %1 : vector<4x1x32xf32> to vector<1x4x1x32xf32>
    %3 = arith.mulf %0, %0 : vector<2x4x8x32xf32>
    %cst = arith.constant dense<0.000000e+00> : vector<2x4x8xf32>
    %4 = vector.multi_reduction <add>, %3, %cst [3] : vector<2x4x8x32xf32> to vector<2x4x8xf32>
    %5 = vector.shape_cast %4 : vector<2x4x8xf32> to vector<2x4x8x1xf32>
    %cst_6 = arith.constant 1.000000e-24 : f32
    %6 = vector.broadcast %cst_6 : f32 to vector<2x4x8x1xf32>
    %7 = arith.maximumf %5, %6 : vector<2x4x8x1xf32>
    %8 = math.rsqrt %7 : vector<2x4x8x1xf32>
    %9 = vector.broadcast %8 : vector<2x4x8x1xf32> to vector<2x4x8x32xf32>
    %10 = arith.mulf %0, %9 : vector<2x4x8x32xf32>
    %11 = vector.broadcast %2 : vector<1x4x1x32xf32> to vector<2x4x8x32xf32>
    %12 = arith.mulf %10, %11 : vector<2x4x8x32xf32>
    %c0_7 = arith.constant 0 : index
    %c0_8 = arith.constant 0 : index
    %c0_9 = arith.constant 0 : index
    %c0_10 = arith.constant 0 : index
    %13 = vector.load %arg5[%c0_7, %c0_8, %c0_9, %c0_10] : memref<2x4x8x32xf32, #tpu.memory_space<vmem>>, vector<2x4x8x32xf32>
    tpu.vector_store %arg5[%c0_7, %c0_8, %c0_9, %c0_10], %12 {strides = array<i32>} : memref<2x4x8x32xf32, #tpu.memory_space<vmem>>, vector<2x4x8x32xf32>,
    return
  }
  func.func @transform_0(%arg0: i32, %arg1: i32, %arg2: i32) -> (i32, i32, i32, i32) {
    %c0_i32 = arith.constant 0 : i32
    %c0_i32_0 = arith.constant 0 : i32
    return %arg0, %arg1, %arg2, %c0_i32 : i32, i32, i32, i32
  }
  func.func @transform_1(%arg0: i32, %arg1: i32, %arg2: i32) -> (i32, i32, i32) {
    %c0_i32 = arith.constant 0 : i32
    %c0_i32_0 = arith.constant 0 : i32
    %c0_i32_1 = arith.constant 0 : i32
    return %arg1, %c0_i32, %c0_i32_0 : i32, i32, i32
  }
  func.func @transform_2(%arg0: i32, %arg1: i32, %arg2: i32) -> (i32, i32, i32, i32) {
    %c0_i32 = arith.constant 0 : i32
    %c0_i32_0 = arith.constant 0 : i32
    return %arg0, %arg1, %arg2, %c0_i32 : i32, i32, i32, i32
  }
}

</mosaic_0001>

<llo_original>
// kernel: tpu_custom_call.1
$region0: #{tpu_custom_call.1}
  #allocation0 [shape = 'u32[]', space=smem, size = 0x4, offset = 0x4, fixed_abs, tag = 'smem constant byte address 0x4 - core index']
  #allocation1 [shape = 'u32[72,128]{1,0:T(1,128)}', space=vmem, size = 0x9000, scoped, tag = 'internal scratch']
  %s0 = inlined_call_operand.hbm [shape: f32[2,4,8,32], index: 0, kind: input, shape index: {}]
  %s1 = inlined_call_operand.hbm [shape: f32[4,1,32], index: 1, kind: input, shape index: {}]
  %s2 = inlined_call_operand.hbm [shape: f32[2,4,8,32], index: 2, kind: output, shape index: {}]
  %s3 = sld [smem:[#allocation0]]
  $region26: #{tpu_custom_call.1} parent=0
    _
  %s5 = ssub.s32 1, %s3
  %s6 = scalar_select 0, %s5, %s3
  $region1: #{tpu_custom_call.1} parent=0
    #allocation2 [shape = 'u8[32768]{0}', space=vmem, size = 0x8000, scoped, tag = 'input window, operand 0, single buffered']
    #allocation3 [shape = 's32[1]{0}', space=sflag, size = 0x4, scoped, tag = 'scoped memory for tpu_custom_call.1']
    #allocation4 [shape = 's32[1]{0}', space=sflag, size = 0x4, scoped, tag = 'scoped memory for tpu_custom_call.1']
    #allocation5 [shape = 'u8[2048]{0}', space=vmem, size = 0x800, scoped, tag = 'input window, operand 1, single buffered']
    #allocation6 [shape = 's32[1]{0}', space=sflag, size = 0x4, scoped, tag = 'scoped memory for tpu_custom_call.1']
    #allocation7 [shape = 'u8[32768]{0}', space=vmem, size = 0x8000, scoped, tag = 'output window, operand 0, single buffered']
    %7 = vsyncpa [#allocation3], 0
    %8 = vsyncpa [#allocation6], 0
    %9 = vsyncpa [#allocation4], 0
    // Predicated region
    $region2: #{tpu_custom_call.1} parent=1 // pred_check
      _
    $region3: #{tpu_custom_call.1} parent=1 // pred_check_branch
      %11 = sbr.rel (0) target = $region5
    $region4: #{tpu_custom_call.1} parent=1 // pred_region
      %13 = vsyncadd [#allocation3], 0
      %s14 = sshll.u32 %s0, 4
      %s15 = int_to_ptr.hbm [resolvable:$true] %s14
      %s16 = sshll.u32 [#allocation2], 4
      %s17 = int_to_ptr.vmem [resolvable:$true] %s16
      %22 = dma.hbm_to_vmem [thread:$0]  %s15, 1024, %s17, [#allocation3], 128, 128, 8
    $region5: #{tpu_custom_call.1} parent=1 // pred_fallthru
      _
    // Predicated region
    $region6: #{tpu_custom_call.1} parent=1 // pred_check
      _
    $region7: #{tpu_custom_call.1} parent=1 // pred_check_branch
      %24 = sbr.rel (0) target = $region9
    $region8: #{tpu_custom_call.1} parent=1 // pred_region
      %26 = vsyncadd [#allocation6], 0
      %s27 = sshll.u32 %s1, 4
      %s28 = int_to_ptr.hbm [resolvable:$true] %s27
      %s29 = sshll.u32 [#allocation5], 4
      %s30 = int_to_ptr.vmem [resolvable:$true] %s29
      %35 = dma.hbm_to_vmem [thread:$0]  %s28, 64, %s30, [#allocation6], 16, 16, 1
    $region9: #{tpu_custom_call.1} parent=1 // pred_fallthru
      _
    // Predicated region
    $region10: #{tpu_custom_call.1} parent=1 // pred_check
      _
    $region11: #{tpu_custom_call.1} parent=1 // pred_check_branch
      %37 = sbr.rel (0) target = $region13
    $region12: #{tpu_custom_call.1} parent=1 // pred_region
      %39 = dma.done [#allocation3], 1024
    $region13: #{tpu_custom_call.1} parent=1 // pred_fallthru
      _
    // Predicated region
    $region14: #{tpu_custom_call.1} parent=1 // pred_check
      _
    $region15: #{tpu_custom_call.1} parent=1 // pred_check_branch
      %41 = sbr.rel (0) target = $region17
    $region16: #{tpu_custom_call.1} parent=1 // pred_region
      %43 = dma.done [#allocation6], 64
    $region17: #{tpu_custom_call.1} parent=1 // pred_fallthru
      _
    %v44 = vld [vmem:[#allocation2] sm:$0xff]
    %v45 = vld [vmem:[#allocation2 + $0x8] sm:$0xff]
    %v46 = vld [vmem:[#allocation2 + $0x10] sm:$0xff]
    %v47 = vld [vmem:[#allocation2 + $0x18] sm:$0xff]
    %v48 = vld [vmem:[#allocation2 + $0x20] sm:$0xff]
    %v49 = vld [vmem:[#allocation2 + $0x28] sm:$0xff]
    %v50 = vld [vmem:[#allocation2 + $0x30] sm:$0xff]
    %v51 = vld [vmem:[#allocation2 + $0x38] sm:$0xff]
    %v52 = vld [vmem:[#allocation5] sm:$0x1]
    %v53 = vld [vmem:[#allocation5 + $0x1] sm:$0x1]
    %v54 = vld [vmem:[#allocation5 + $0x2] sm:$0x1]
    %v55 = vld [vmem:[#allocation5 + $0x3] sm:$0x1]
    %v56 = vmul.f32 %v44, %v44
    %v57 = vmul.f32 %v45, %v45
    %v58 = vmul.f32 %v46, %v46
    %v59 = vmul.f32 %v47, %v47
    %v60 = vmul.f32 %v48, %v48
    %v61 = vmul.f32 %v49, %v49
    %v62 = vmul.f32 %v50, %v50
    %v63 = vmul.f32 %v51, %v51
    %vm64 = vcmask 261120
    %v65 = vsel %vm64, %v56, 0.0
    %66 = vadd.xlane.f32.xlu0 %v65
    %v67 = vpop.xlane.xlu0 %66
    %v68 = vsel %vm64, %v57, 0.0
    %69 = vadd.xlane.f32.xlu0 %v68
    %v70 = vpop.xlane.xlu0 %69
    %v71 = vsel %vm64, %v58, 0.0
    %72 = vadd.xlane.f32.xlu0 %v71
    %v73 = vpop.xlane.xlu0 %72
    %v74 = vsel %vm64, %v59, 0.0
    %75 = vadd.xlane.f32.xlu0 %v74
    %v76 = vpop.xlane.xlu0 %75
    %v77 = vsel %vm64, %v60, 0.0
    %78 = vadd.xlane.f32.xlu0 %v77
    %v79 = vpop.xlane.xlu0 %78
    %v80 = vsel %vm64, %v61, 0.0
    %81 = vadd.xlane.f32.xlu0 %v80
    %v82 = vpop.xlane.xlu0 %81
    %v83 = vsel %vm64, %v62, 0.0
    %84 = vadd.xlane.f32.xlu0 %v83
    %v85 = vpop.xlane.xlu0 %84
    %v86 = vsel %vm64, %v63, 0.0
    %87 = vadd.xlane.f32.xlu0 %v86
    %v88 = vpop.xlane.xlu0 %87
    %v89 = vmax.f32 %v67, 1e-24
    %v90 = vmax.f32 %v70, 1e-24
    %v91 = vmax.f32 %v73, 1e-24
    %v92 = vmax.f32 %v76, 1e-24
    %v93 = vmax.f32 %v79, 1e-24
    %v94 = vmax.f32 %v82, 1e-24
    %v95 = vmax.f32 %v85, 1e-24
    %v96 = vmax.f32 %v88, 1e-24
    %v97 = vrsqrt.pop %v89
    %v98 = vmul.f32 %v97, %v89
    %v99 = vmul.f32 %v98, %v97
    %v100 = vmul.f32 0.5, %v99
    %v101 = vsub.f32 1.5, %v100
    %v102 = vmul.f32 %v97, %v101
    %vm103 = vweird.f32 %v89
    %vm104 = vweird.f32 %v97
    %vm105 = vmor %vm103, %vm104
    %v106 = vsel %vm105, %v97, %v102
    %v107 = vrsqrt.pop %v90
    %v108 = vmul.f32 %v107, %v90
    %v109 = vmul.f32 %v108, %v107
    %v110 = vmul.f32 0.5, %v109
    %v111 = vsub.f32 1.5, %v110
    %v112 = vmul.f32 %v107, %v111
    %vm113 = vweird.f32 %v90
    %vm114 = vweird.f32 %v107
    %vm115 = vmor %vm113, %vm114
    %v116 = vsel %vm115, %v107, %v112
    %v117 = vrsqrt.pop %v91
    %v118 = vmul.f32 %v117, %v91
    %v119 = vmul.f32 %v118, %v117
    %v120 = vmul.f32 0.5, %v119
    %v121 = vsub.f32 1.5, %v120
    %v122 = vmul.f32 %v117, %v121
    %vm123 = vweird.f32 %v91
    %vm124 = vweird.f32 %v117
    %vm125 = vmor %vm123, %vm124
    %v126 = vsel %vm125, %v117, %v122
    %v127 = vrsqrt.pop %v92
    %v128 = vmul.f32 %v127, %v92
    %v129 = vmul.f32 %v128, %v127
    %v130 = vmul.f32 0.5, %v129
    %v131 = vsub.f32 1.5, %v130
    %v132 = vmul.f32 %v127, %v131
    %vm133 = vweird.f32 %v92
    %vm134 = vweird.f32 %v127
    %vm135 = vmor %vm133, %vm134
    %v136 = vsel %vm135, %v127, %v132
    %v137 = vrsqrt.pop %v93
    %v138 = vmul.f32 %v137, %v93
    %v139 = vmul.f32 %v138, %v137
    %v140 = vmul.f32 0.5, %v139
    %v141 = vsub.f32 1.5, %v140
    %v142 = vmul.f32 %v137, %v141
    %vm143 = vweird.f32 %v93
    %vm144 = vweird.f32 %v137
    %vm145 = vmor %vm143, %vm144
    %v146 = vsel %vm145, %v137, %v142
    %v147 = vrsqrt.pop %v94
    %v148 = vmul.f32 %v147, %v94
    %v149 = vmul.f32 %v148, %v147
    %v150 = vmul.f32 0.5, %v149
    %v151 = vsub.f32 1.5, %v150
    %v152 = vmul.f32 %v147, %v151
    %vm153 = vweird.f32 %v94
    %vm154 = vweird.f32 %v147
    %vm155 = vmor %vm153, %vm154
    %v156 = vsel %vm155, %v147, %v152
    %v157 = vrsqrt.pop %v95
    %v158 = vmul.f32 %v157, %v95
    %v159 = vmul.f32 %v158, %v157
    %v160 = vmul.f32 0.5, %v159
    %v161 = vsub.f32 1.5, %v160
    %v162 = vmul.f32 %v157, %v161
    %vm163 = vweird.f32 %v95
    %vm164 = vweird.f32 %v157
    %vm165 = vmor %vm163, %vm164
    %v166 = vsel %vm165, %v157, %v162
    %v167 = vrsqrt.pop %v96
    %v168 = vmul.f32 %v167, %v96
    %v169 = vmul.f32 %v168, %v167
    %v170 = vmul.f32 0.5, %v169
    %v171 = vsub.f32 1.5, %v170
    %v172 = vmul.f32 %v167, %v171
    %vm173 = vweird.f32 %v96
    %vm174 = vweird.f32 %v167
    %vm175 = vmor %vm173, %vm174
    %v176 = vsel %vm175, %v167, %v172
    %v177 = vmul.f32 %v44, %v106
    %v178 = vmul.f32 %v45, %v116
    %v179 = vmul.f32 %v46, %v126
    %v180 = vmul.f32 %v47, %v136
    %v181 = vmul.f32 %v48, %v146
    %v182 = vmul.f32 %v49, %v156
    %v183 = vmul.f32 %v50, %v166
    %v184 = vmul.f32 %v51, %v176
    %v189 = vperm.slane %v52, 0
    %v190 = vperm.slane %v53, 0
    %v191 = vperm.slane %v54, 0
    %v192 = vperm.slane %v55, 0
    %v197 = vmul.f32 %v177, %v189
    %v198 = vmul.f32 %v178, %v190
    %v199 = vmul.f32 %v179, %v191
    %v200 = vmul.f32 %v180, %v192
    %v201 = vmul.f32 %v181, %v189
    %v202 = vmul.f32 %v182, %v190
    %v203 = vmul.f32 %v183, %v191
    %v204 = vmul.f32 %v184, %v192
    %205 = vst.msk [vmem:[#allocation7] sm:$0xff] %vm64, %v197
    %206 = vst.msk [vmem:[#allocation7 + $0x8] sm:$0xff] %vm64, %v198
    %207 = vst.msk [vmem:[#allocation7 + $0x10] sm:$0xff] %vm64, %v199
    %208 = vst.msk [vmem:[#allocation7 + $0x18] sm:$0xff] %vm64, %v200
    %209 = vst.msk [vmem:[#allocation7 + $0x20] sm:$0xff] %vm64, %v201
    %210 = vst.msk [vmem:[#allocation7 + $0x28] sm:$0xff] %vm64, %v202
    %211 = vst.msk [vmem:[#allocation7 + $0x30] sm:$0xff] %vm64, %v203
    %212 = vst.msk [vmem:[#allocation7 + $0x38] sm:$0xff] %vm64, %v204
    // Predicated region
    $region18: #{tpu_custom_call.1} parent=1 // pred_check
      _
    $region19: #{tpu_custom_call.1} parent=1 // pred_check_branch
      %214 = sbr.rel (0) target = $region21
    $region20: #{tpu_custom_call.1} parent=1 // pred_region
      %216 = vsyncadd [#allocation4], 0
      %s217 = sshll.u32 [#allocation7], 4
      %s218 = int_to_ptr.vmem [resolvable:$true] %s217
      %s219 = sshll.u32 %s2, 4
      %s220 = int_to_ptr.hbm [resolvable:$true] %s219
      %225 = dma.vmem_to_hbm [thread:$0]  %s218, 1024, %s220, [#allocation4], 128, 128, 8
    $region21: #{tpu_custom_call.1} parent=1 // pred_fallthru
      _
    // Predicated region
    $region22: #{tpu_custom_call.1} parent=1 // pred_check
      _
    $region23: #{tpu_custom_call.1} parent=1 // pred_check_branch
      %227 = sbr.rel (0) target = $region25
    $region24: #{tpu_custom_call.1} parent=1 // pred_region
      %229 = dma.done [#allocation4], 1024
    $region25: #{tpu_custom_call.1} parent=1 // pred_fallthru
      _
    %230 = vsyncpa [#allocation3], 1
    %231 = vsyncpa [#allocation6], 1
    %232 = vsyncpa [#allocation4], 1

</llo_original>
